<compile_context>
chip_gen: v7x
topology: tpu7x:2x2x1
jax: 0.10.0
libtpu: 0.0.40
codegen_flags: <defaults>
</compile_context>

<pallas_src>
import math

import jax
import jax.numpy as jnp
from jax import lax
from jax.experimental import pallas as pl
from jax.experimental.pallas import tpu as pltpu


def _num_tensorcores_per_chip():
    """Heuristic: v7x has 2 TensorCores per chip; v5e/v6e have 1."""
    try:
        kind = jax.devices()[0].device_kind.lower()
    except Exception:
        return 1
    return 2 if "v7" in kind else 1


# --------------------------------------------------------------------------- #
# Fast path (default).  Because the reference softmax is over a size-1 axis,
# the module output is exactly sum_N(image) + sum_T(embedding).
# --------------------------------------------------------------------------- #
def _pooled_sum_kernel(img_ref, emb_ref, out_ref):
    # img_ref: (TB, N, D) f32, emb_ref: (TB, T, D) f32, out_ref: (TB, D) f32
    out_ref[...] = (jnp.sum(img_ref[...], axis=1) +
                    jnp.sum(emb_ref[...], axis=1))


# --------------------------------------------------------------------------- #
# Full chain (flag-gated): complete module math; same output as the fast path
# because the degenerate softmax folds to 1.0.
# --------------------------------------------------------------------------- #
def _coattention_full_kernel(img_ref, emb_ref, wbq_ref, wvt_ref,
                             whv_ref, whq_ref, out_ref):
    TB, N, D = img_ref.shape      # image chunk     (TB, N, D), f32
    _, T, _ = emb_ref.shape       # embedding chunk (TB, T, D), f32
    k = wvt_ref.shape[1]
    f32 = jnp.float32
    bf16 = jnp.bfloat16

    img = img_ref[...]            # f32 copies retained only for the final pooling
    emb = emb_ref[...]
    img16 = img.astype(bf16)      # bf16 MXU operands (cast once, at consumption)
    emb16 = emb.astype(bf16)

    # Embedding path: ONE MXU matmul against [W_b | W_q^T] (fills the 256-wide MXU
    # N dimension on v6e/v7x), then a lane-aligned slice at column D.
    embW = jnp.dot(emb16.reshape(TB * T, D), wbq_ref[...],
                   preferred_element_type=f32)                    # (TB*T, D+k)
    ewb = embW[:, :D]                                             # emb^T W_b
    wqe = embW[:, D:].reshape(TB, T, k)                           # (W_q emb)^T

    # Image path: flattened batch-chunk matmul (large MXU M dim).
    wvi = jnp.dot(img16.reshape(TB * N, D), wvt_ref[...],
                  preferred_element_type=f32).reshape(TB, N, k)   # (W_v img)^T

    # Affinity C = tanh(emb^T W_b img): batched contraction over D, no transposes.
    C = jnp.tanh(lax.dot_general(
        ewb.astype(bf16).reshape(TB, T, D), img16,
        dimension_numbers=(((2,), (2,)), ((0,), (0,))),
        preferred_element_type=f32))                              # (TB, T, N)
    # TODO(synk): nn.Dropout(p=0.5) layers are identity here (eval/inference semantics).

    C16 = C.astype(bf16)
    # TODO(synk): K = T (8) / K = N (16) badly underfills the systolic array; an
    # unrolled VPU multiply-accumulate over T/N could beat these MXU matmuls --
    # kept as lax.dot_general for lowering robustness (verify in a bundle dump).
    h_v = jnp.tanh(wvi + lax.dot_general(
        C16, wqe.astype(bf16),
        dimension_numbers=(((1,), (1,)), ((0,), (0,))),
        preferred_element_type=f32))                              # (TB, N, k)
    h_q = jnp.tanh(wqe + lax.dot_general(
        C16, wvi.astype(bf16),
        dimension_numbers=(((2,), (1,)), ((0,), (0,))),
        preferred_element_type=f32))                              # (TB, T, k)

    # Logits: M=1 matmuls done as VPU broadcast-multiply + lane reduction.
    logits_v = jnp.sum(h_v * whv_ref[...][None, :, :], axis=-1)   # (TB, N)
    logits_q = jnp.sum(h_q * whq_ref[...][None, :, :], axis=-1)   # (TB, T)

    # softmax over the size-1 head axis (F.softmax(dim=1) in the reference):
    # max/sum over a length-1 axis are the value itself, so the weights are exactly
    # 1.0.  Logits are tanh-bounded hence always finite -- no NaN path here.
    a_v = jnp.exp(logits_v - logits_v)
    a_v = a_v / a_v                                               # == 1.0
    a_q = jnp.exp(logits_q - logits_q)
    a_q = a_q / a_q                                               # == 1.0

    # Attended pooling: VPU broadcast-multiply + reduction over regions / tokens.
    v = jnp.sum(a_v[:, :, None] * img, axis=1)                    # (TB, D)
    b = jnp.sum(a_q[:, :, None] * emb, axis=1)                    # (TB, D)
    out_ref[...] = v + b                                          # lane-dense (TB, D)


def _chunking(B, tb_max):
    """Batch-chunking policy per chip generation."""
    n_tc = _num_tensorcores_per_chip()
    if n_tc > 1 and B > 1:
        # v7x (2 TCs): keep an even (>= n_tc) number of chunks so the parallel
        # batch axis can shard across both TensorCores.
        num_chunks = max(n_tc, pl.cdiv(B, tb_max))
        num_chunks = pl.cdiv(num_chunks, n_tc) * n_tc
        num_chunks = min(num_chunks, B)
    else:
        # v5e / v6e (single TC): one chunk if it fits -> biggest flattened matmul M,
        # no extra per-grid-step overhead.
        num_chunks = pl.cdiv(B, tb_max)
    TB = pl.cdiv(B, num_chunks)
    return num_chunks, TB


def _run(build_fn):
    """Build+run a pallas_call; on v7x try CORE_PARALLEL so the batch-chunk grid
    axis shards across both TensorCores, falling back to 'parallel' otherwise."""
    if _num_tensorcores_per_chip() > 1:
        try:
            return jax.block_until_ready(build_fn((pltpu.CORE_PARALLEL,)))
        except Exception:
            pass  # runtime rejected CORE_PARALLEL; fall back to plain parallel
    return build_fn(("parallel",))


def parallel_coattention(image, embedding, W_b, W_v, W_q, w_hv, w_hq, *,
                         use_full_chain=False, tb_max=32):
    """Forward pass of ParallelCoattention: (B, D, N), (B, D, T) -> (B, D).

    use_full_chain=False (default) exploits the degenerate size-1 softmax of the
    reference (a_v == a_q == 1.0) and runs a DMA-bound pooled-sum kernel;
    use_full_chain=True runs the complete attention chain (identical output).
    """
    B, D, N = image.shape
    _, _, T = embedding.shape
    k = W_v.shape[0]

    # Layout plumbing (outside the kernel): channel axis D onto the lane axis.
    img_t = jnp.swapaxes(image, 1, 2).astype(jnp.float32)       # (B, N, D)
    emb_t = jnp.swapaxes(embedding, 1, 2).astype(jnp.float32)   # (B, T, D)

    # tb_max=32 targets TB*T >= 256 / TB*N >= 256 MXU fill on v6e/v7x (>=128 on v5e)
    # when the batch is large enough; bounded by B otherwise.
    num_chunks, TB = _chunking(B, tb_max)
    Bp = TB * num_chunks
    if Bp != B:
        pad = ((0, Bp - B), (0, 0), (0, 0))
        img_t = jnp.pad(img_t, pad)
        emb_t = jnp.pad(emb_t, pad)

    # 32 MiB: above the v5e 16 MiB scoped default, under the v7x ~48 MiB cap.
    def params(sems):
        return pltpu.CompilerParams(dimension_semantics=sems,
                                    vmem_limit_bytes=32 * 1024 * 1024)

    if not use_full_chain:
        def build(sems):
            return pl.pallas_call(
                _pooled_sum_kernel,
                out_shape=jax.ShapeDtypeStruct((Bp, D), jnp.float32),
                grid=(num_chunks,),
                in_specs=[pl.BlockSpec((TB, N, D), lambda b: (b, 0, 0)),
                          pl.BlockSpec((TB, T, D), lambda b: (b, 0, 0))],
                out_specs=pl.BlockSpec((TB, D), lambda b: (b, 0)),
                compiler_params=params(sems),
            )(img_t, emb_t)
        return _run(build)[:B]

    # Full chain: weights pre-transposed / concatenated once in the wrapper so every
    # in-kernel contraction is over D with no .T ([W_b | W_q^T] fills MXU N=256).
    wbq16 = jnp.concatenate([W_b, W_q.T], axis=1).astype(jnp.bfloat16)   # (D, D+k)
    wvt16 = W_v.T.astype(jnp.bfloat16)                                   # (D, k)
    whv = w_hv.astype(jnp.float32)                                       # (1, k)
    whq = w_hq.astype(jnp.float32)                                       # (1, k)

    def build(sems):
        return pl.pallas_call(
            _coattention_full_kernel,
            out_shape=jax.ShapeDtypeStruct((Bp, D), jnp.float32),
            grid=(num_chunks,),
            in_specs=[
                pl.BlockSpec((TB, N, D), lambda b: (b, 0, 0)),   # image chunk
                pl.BlockSpec((TB, T, D), lambda b: (b, 0, 0)),   # embedding chunk
                # Weights: constant index_map -> fetched once and revisited.
                # TODO(synk): pipeline_mode=pl.Buffered(1) would drop the redundant
                # second resident weight buffer at large D; default kept for
                # lowering portability.
                pl.BlockSpec((D, D + k), lambda b: (0, 0)),      # [W_b | W_q^T] bf16
                pl.BlockSpec((D, k), lambda b: (0, 0)),          # W_v^T bf16
                pl.BlockSpec((1, k), lambda b: (0, 0)),          # w_hv f32
                pl.BlockSpec((1, k), lambda b: (0, 0)),          # w_hq f32
            ],
            out_specs=pl.BlockSpec((TB, D), lambda b: (b, 0)),   # lane-dense slab
            compiler_params=params(sems),
        )(img_t, emb_t, wbq16, wvt16, whv, whq)
    return _run(build)[:B]


def _xavier_uniform(key, shape):
    fan_out, fan_in = shape
    bound = math.sqrt(6.0 / (fan_in + fan_out))
    return jax.random.uniform(key, shape, jnp.float32, -bound, bound)


def _reference(image, embedding, W_b, W_v, W_q, w_hv, w_hq):
    # Pure-JAX mirror of the PyTorch forward (dropout = identity).
    B, D, _ = image.shape
    embT = jnp.transpose(embedding, (0, 2, 1))                       # (B, T, D)
    C = jnp.tanh(embT @ W_b @ image)                                  # (B, T, N)
    H_v = jnp.tanh(W_v @ image + (W_q @ embedding) @ C)               # (B, k, N)
    H_q = jnp.tanh(W_q @ embedding
                   + (W_v @ image) @ jnp.transpose(C, (0, 2, 1)))     # (B, k, T)
    a_v = jax.nn.softmax(w_hv @ H_v, axis=1)                          # (B, 1, N)
    a_q = jax.nn.softmax(w_hq @ H_q, axis=1)                          # (B, 1, T)
    v = a_v @ jnp.transpose(image, (0, 2, 1))                         # (B, 1, D)
    b = a_q @ jnp.transpose(embedding, (0, 2, 1))                     # (B, 1, D)
    return (v + b).reshape(B, D)


if __name__ == "__main__":
    # Small but MXU/lane-friendly shapes.
    B, D, k, N, T = 16, 128, 128, 16, 8

    key = jax.random.PRNGKey(0)
    k_img, k_emb, k_wb, k_wv, k_wq, k_whv, k_whq = jax.random.split(key, 7)

    image = jax.random.normal(k_img, (B, D, N), jnp.float32)
    embedding = jax.random.normal(k_emb, (B, D, T), jnp.float32)

    W_b = _xavier_uniform(k_wb, (D, D))
    W_v = _xavier_uniform(k_wv, (k, D))
    W_q = _xavier_uniform(k_wq, (k, D))
    w_hv = _xavier_uniform(k_whv, (1, k))
    w_hq = _xavier_uniform(k_whq, (1, k))

    ref = _reference(image, embedding, W_b, W_v, W_q, w_hv, w_hq)

    # Default fast path (degenerate softmax folded away -> DMA-bound reduction).
    out_fast = jax.block_until_ready(
        parallel_coattention(image, embedding, W_b, W_v, W_q, w_hv, w_hq))
    assert out_fast.shape == (B, D)
    assert jnp.allclose(out_fast, ref, atol=1e-4, rtol=1e-4), "fast path mismatch"

    # Flag-gated full attention chain (identical output; kept for a fixed softmax axis).
    out_full = jax.block_until_ready(
        parallel_coattention(image, embedding, W_b, W_v, W_q, w_hv, w_hq,
                             use_full_chain=True))
    assert out_full.shape == (B, D)
    assert jnp.allclose(out_full, ref, atol=1e-4, rtol=1e-4), "full chain mismatch"

    print("KERNEL_OK")
</pallas_src>

<mosaic_0001>
module attributes {stable_mosaic.version = 11 : i64} {
  func.func @_pooled_sum_kernel(%arg0: i32, %arg1: memref<16x16x128xf32, #tpu.memory_space<vmem>>, %arg2: memref<16x8x128xf32, #tpu.memory_space<vmem>>, %arg3: memref<16x128xf32, #tpu.memory_space<vmem>>) attributes {dimension_semantics = [#tpu.dimension_semantics<parallel>], iteration_bounds = array<i64: 1>, scalar_prefetch = 0 : i64, scratch_operands = 0 : i64, tpu.core_type = #tpu.core_type<tc>, window_params = [{transform_indices = @transform_0, window_bounds = array<i64: 16, 16, 128>}, {transform_indices = @transform_1, window_bounds = array<i64: 16, 8, 128>}, {transform_indices = @transform_2, window_bounds = array<i64: 16, 128>}]} {
    %c0 = arith.constant 0 : index
    %c0_0 = arith.constant 0 : index
    %c0_1 = arith.constant 0 : index
    %0 = vector.load %arg1[%c0, %c0_0, %c0_1] : memref<16x16x128xf32, #tpu.memory_space<vmem>>, vector<16x16x128xf32>
    %cst = arith.constant dense<0.000000e+00> : vector<16x128xf32>
    %1 = vector.multi_reduction <add>, %0, %cst [1] : vector<16x16x128xf32> to vector<16x128xf32>
    %c0_2 = arith.constant 0 : index
    %c0_3 = arith.constant 0 : index
    %c0_4 = arith.constant 0 : index
    %2 = vector.load %arg2[%c0_2, %c0_3, %c0_4] : memref<16x8x128xf32, #tpu.memory_space<vmem>>, vector<16x8x128xf32>
    %cst_5 = arith.constant dense<0.000000e+00> : vector<16x128xf32>
    %3 = vector.multi_reduction <add>, %2, %cst_5 [1] : vector<16x8x128xf32> to vector<16x128xf32>
    %4 = arith.addf %1, %3 : vector<16x128xf32>
    %c0_6 = arith.constant 0 : index
    %c0_7 = arith.constant 0 : index
    %5 = vector.load %arg3[%c0_6, %c0_7] : memref<16x128xf32, #tpu.memory_space<vmem>>, vector<16x128xf32>
    tpu.vector_store %arg3[%c0_6, %c0_7], %4 {strides = array<i32>} : memref<16x128xf32, #tpu.memory_space<vmem>>, vector<16x128xf32>,
    return
  }
  func.func @transform_0(%arg0: i32) -> (i32, i32, i32) {
    %c0_i32 = arith.constant 0 : i32
    %c0_i32_0 = arith.constant 0 : i32
    %c0_i32_1 = arith.constant 0 : i32
    return %arg0, %c0_i32, %c0_i32_0 : i32, i32, i32
  }
  func.func @transform_1(%arg0: i32) -> (i32, i32, i32) {
    %c0_i32 = arith.constant 0 : i32
    %c0_i32_0 = arith.constant 0 : i32
    %c0_i32_1 = arith.constant 0 : i32
    return %arg0, %c0_i32, %c0_i32_0 : i32, i32, i32
  }
  func.func @transform_2(%arg0: i32) -> (i32, i32) {
    %c0_i32 = arith.constant 0 : i32
    %c0_i32_0 = arith.constant 0 : i32
    return %arg0, %c0_i32 : i32, i32
  }
}

</mosaic_0001>

<llo_original>
// kernel: tpu_custom_call.1
$region0: #{tpu_custom_call.1}
  #allocation0 [shape = 'u32[]', space=smem, size = 0x4, offset = 0x4, fixed_abs, tag = 'smem constant byte address 0x4 - core index']
  #allocation1 [shape = 'u32[144,128]{1,0:T(1,128)}', space=vmem, size = 0x12000, scoped, tag = 'internal scratch']
  %s0 = inlined_call_operand.hbm [shape: f32[16,16,128], index: 0, kind: input, shape index: {}]
  %s1 = inlined_call_operand.hbm [shape: f32[16,8,128], index: 1, kind: input, shape index: {}]
  %s2 = inlined_call_operand.hbm [shape: f32[16,128], index: 2, kind: output, shape index: {}]
  %s3 = sld [smem:[#allocation0]]
  $region26: #{tpu_custom_call.1} parent=0
    _
  %s5 = ssub.s32 1, %s3
  %s6 = scalar_select 0, %s5, %s3
  $region1: #{tpu_custom_call.1} parent=0
    #allocation2 [shape = 'u8[131072]{0}', space=vmem, size = 0x20000, scoped, tag = 'input window, operand 0, single buffered']
    #allocation3 [shape = 's32[1]{0}', space=sflag, size = 0x4, scoped, tag = 'scoped memory for tpu_custom_call.1']
    #allocation4 [shape = 's32[1]{0}', space=sflag, size = 0x4, scoped, tag = 'scoped memory for tpu_custom_call.1']
    #allocation5 [shape = 'u8[65536]{0}', space=vmem, size = 0x10000, scoped, tag = 'input window, operand 1, single buffered']
    #allocation6 [shape = 's32[1]{0}', space=sflag, size = 0x4, scoped, tag = 'scoped memory for tpu_custom_call.1']
    #allocation7 [shape = 'u8[8192]{0}', space=vmem, size = 0x2000, scoped, tag = 'output window, operand 0, single buffered']
    %7 = vsyncpa [#allocation3], 0
    %8 = vsyncpa [#allocation6], 0
    %9 = vsyncpa [#allocation4], 0
    // Predicated region
    $region2: #{tpu_custom_call.1} parent=1 // pred_check
      _
    $region3: #{tpu_custom_call.1} parent=1 // pred_check_branch
      %11 = sbr.rel (0) target = $region5
    $region4: #{tpu_custom_call.1} parent=1 // pred_region
      %s13 = ssub.s32 4096, 4096
      %14 = vsyncadd [#allocation3], %s13
      %s15 = sshll.u32 [#allocation2], 4
      %s16 = int_to_ptr.vmem [resolvable:$true] %s15
      %21 = dma.hbm_to_vmem [thread:$0]  %s0, 4096, %s16, [#allocation3], 128, 128, 8
    $region5: #{tpu_custom_call.1} parent=1 // pred_fallthru
      _
    // Predicated region
    $region6: #{tpu_custom_call.1} parent=1 // pred_check
      _
    $region7: #{tpu_custom_call.1} parent=1 // pred_check_branch
      %23 = sbr.rel (0) target = $region9
    $region8: #{tpu_custom_call.1} parent=1 // pred_region
      %s25 = ssub.s32 2048, 2048
      %26 = vsyncadd [#allocation6], %s25
      %s27 = sshll.u32 [#allocation5], 4
      %s28 = int_to_ptr.vmem [resolvable:$true] %s27
      %33 = dma.hbm_to_vmem [thread:$0]  %s1, 2048, %s28, [#allocation6], 128, 128, 8
    $region9: #{tpu_custom_call.1} parent=1 // pred_fallthru
      _
    // Predicated region
    $region10: #{tpu_custom_call.1} parent=1 // pred_check
      _
    $region11: #{tpu_custom_call.1} parent=1 // pred_check_branch
      %35 = sbr.rel (0) target = $region13
    $region12: #{tpu_custom_call.1} parent=1 // pred_region
      %36 = dma.done [#allocation3], 4096
    $region13: #{tpu_custom_call.1} parent=1 // pred_fallthru
      _
    // Predicated region
    $region14: #{tpu_custom_call.1} parent=1 // pred_check
      _
    $region15: #{tpu_custom_call.1} parent=1 // pred_check_branch
      %38 = sbr.rel (0) target = $region17
    $region16: #{tpu_custom_call.1} parent=1 // pred_region
      %39 = dma.done [#allocation6], 2048
    $region17: #{tpu_custom_call.1} parent=1 // pred_fallthru
      _
    %v40 = vld [vmem:[#allocation2] sm:$0xff]
    %v41 = vld [vmem:[#allocation2 + $0x8] sm:$0xff]
    %v42 = vld [vmem:[#allocation2 + $0x10] sm:$0xff]
    %v43 = vld [vmem:[#allocation2 + $0x18] sm:$0xff]
    %v44 = vld [vmem:[#allocation2 + $0x20] sm:$0xff]
    %v45 = vld [vmem:[#allocation2 + $0x28] sm:$0xff]
    %v46 = vld [vmem:[#allocation2 + $0x30] sm:$0xff]
    %v47 = vld [vmem:[#allocation2 + $0x38] sm:$0xff]
    %v48 = vld [vmem:[#allocation2 + $0x40] sm:$0xff]
    %v49 = vld [vmem:[#allocation2 + $0x48] sm:$0xff]
    %v50 = vld [vmem:[#allocation2 + $0x50] sm:$0xff]
    %v51 = vld [vmem:[#allocation2 + $0x58] sm:$0xff]
    %v52 = vld [vmem:[#allocation2 + $0x60] sm:$0xff]
    %v53 = vld [vmem:[#allocation2 + $0x68] sm:$0xff]
    %v54 = vld [vmem:[#allocation2 + $0x70] sm:$0xff]
    %v55 = vld [vmem:[#allocation2 + $0x78] sm:$0xff]
    %v56 = vld [vmem:[#allocation2 + $0x80] sm:$0xff]
    %v57 = vld [vmem:[#allocation2 + $0x88] sm:$0xff]
    %v58 = vld [vmem:[#allocation2 + $0x90] sm:$0xff]
    %v59 = vld [vmem:[#allocation2 + $0x98] sm:$0xff]
    %v60 = vld [vmem:[#allocation2 + $0xa0] sm:$0xff]
    %v61 = vld [vmem:[#allocation2 + $0xa8] sm:$0xff]
    %v62 = vld [vmem:[#allocation2 + $0xb0] sm:$0xff]
    %v63 = vld [vmem:[#allocation2 + $0xb8] sm:$0xff]
    %v64 = vld [vmem:[#allocation2 + $0xc0] sm:$0xff]
    %v65 = vld [vmem:[#allocation2 + $0xc8] sm:$0xff]
    %v66 = vld [vmem:[#allocation2 + $0xd0] sm:$0xff]
    %v67 = vld [vmem:[#allocation2 + $0xd8] sm:$0xff]
    %v68 = vld [vmem:[#allocation2 + $0xe0] sm:$0xff]
    %v69 = vld [vmem:[#allocation2 + $0xe8] sm:$0xff]
    %v70 = vld [vmem:[#allocation2 + $0xf0] sm:$0xff]
    %v71 = vld [vmem:[#allocation2 + $0xf8] sm:$0xff]
    %v72 = vadd.f32 %v40, %v41
    %v73 = vrot.slane %v72, 4
    %v74 = vadd.f32 %v72, %v73
    %v75 = vrot.slane %v74, 2
    %v76 = vadd.f32 %v74, %v75
    %v77 = vrot.slane %v76, 1
    %v78 = vadd.f32 %v76, %v77
    %v79 = vadd.f32 %v42, %v43
    %v80 = vrot.slane %v79, 4
    %v81 = vadd.f32 %v79, %v80
    %v82 = vrot.slane %v81, 2
    %v83 = vadd.f32 %v81, %v82
    %v84 = vrot.slane %v83, 1
    %v85 = vadd.f32 %v83, %v84
    %v86 = vadd.f32 %v44, %v45
    %v87 = vrot.slane %v86, 4
    %v88 = vadd.f32 %v86, %v87
    %v89 = vrot.slane %v88, 2
    %v90 = vadd.f32 %v88, %v89
    %v91 = vrot.slane %v90, 1
    %v92 = vadd.f32 %v90, %v91
    %v93 = vadd.f32 %v46, %v47
    %v94 = vrot.slane %v93, 4
    %v95 = vadd.f32 %v93, %v94
    %v96 = vrot.slane %v95, 2
    %v97 = vadd.f32 %v95, %v96
    %v98 = vrot.slane %v97, 1
    %v99 = vadd.f32 %v97, %v98
    %v100 = vadd.f32 %v48, %v49
    %v101 = vrot.slane %v100, 4
    %v102 = vadd.f32 %v100, %v101
    %v103 = vrot.slane %v102, 2
    %v104 = vadd.f32 %v102, %v103
    %v105 = vrot.slane %v104, 1
    %v106 = vadd.f32 %v104, %v105
    %v107 = vadd.f32 %v50, %v51
    %v108 = vrot.slane %v107, 4
    %v109 = vadd.f32 %v107, %v108
    %v110 = vrot.slane %v109, 2
    %v111 = vadd.f32 %v109, %v110
    %v112 = vrot.slane %v111, 1
    %v113 = vadd.f32 %v111, %v112
    %v114 = vadd.f32 %v52, %v53
    %v115 = vrot.slane %v114, 4
    %v116 = vadd.f32 %v114, %v115
    %v117 = vrot.slane %v116, 2
    %v118 = vadd.f32 %v116, %v117
    %v119 = vrot.slane %v118, 1
    %v120 = vadd.f32 %v118, %v119
    %v121 = vadd.f32 %v54, %v55
    %v122 = vrot.slane %v121, 4
    %v123 = vadd.f32 %v121, %v122
    %v124 = vrot.slane %v123, 2
    %v125 = vadd.f32 %v123, %v124
    %v126 = vrot.slane %v125, 1
    %v127 = vadd.f32 %v125, %v126
    %v128 = vadd.f32 %v56, %v57
    %v129 = vrot.slane %v128, 4
    %v130 = vadd.f32 %v128, %v129
    %v131 = vrot.slane %v130, 2
    %v132 = vadd.f32 %v130, %v131
    %v133 = vrot.slane %v132, 1
    %v134 = vadd.f32 %v132, %v133
    %v135 = vadd.f32 %v58, %v59
    %v136 = vrot.slane %v135, 4
    %v137 = vadd.f32 %v135, %v136
    %v138 = vrot.slane %v137, 2
    %v139 = vadd.f32 %v137, %v138
    %v140 = vrot.slane %v139, 1
    %v141 = vadd.f32 %v139, %v140
    %v142 = vadd.f32 %v60, %v61
    %v143 = vrot.slane %v142, 4
    %v144 = vadd.f32 %v142, %v143
    %v145 = vrot.slane %v144, 2
    %v146 = vadd.f32 %v144, %v145
    %v147 = vrot.slane %v146, 1
    %v148 = vadd.f32 %v146, %v147
    %v149 = vadd.f32 %v62, %v63
    %v150 = vrot.slane %v149, 4
    %v151 = vadd.f32 %v149, %v150
    %v152 = vrot.slane %v151, 2
    %v153 = vadd.f32 %v151, %v152
    %v154 = vrot.slane %v153, 1
    %v155 = vadd.f32 %v153, %v154
    %v156 = vadd.f32 %v64, %v65
    %v157 = vrot.slane %v156, 4
    %v158 = vadd.f32 %v156, %v157
    %v159 = vrot.slane %v158, 2
    %v160 = vadd.f32 %v158, %v159
    %v161 = vrot.slane %v160, 1
    %v162 = vadd.f32 %v160, %v161
    %v163 = vadd.f32 %v66, %v67
    %v164 = vrot.slane %v163, 4
    %v165 = vadd.f32 %v163, %v164
    %v166 = vrot.slane %v165, 2
    %v167 = vadd.f32 %v165, %v166
    %v168 = vrot.slane %v167, 1
    %v169 = vadd.f32 %v167, %v168
    %v170 = vadd.f32 %v68, %v69
    %v171 = vrot.slane %v170, 4
    %v172 = vadd.f32 %v170, %v171
    %v173 = vrot.slane %v172, 2
    %v174 = vadd.f32 %v172, %v173
    %v175 = vrot.slane %v174, 1
    %v176 = vadd.f32 %v174, %v175
    %v177 = vadd.f32 %v70, %v71
    %v178 = vrot.slane %v177, 4
    %v179 = vadd.f32 %v177, %v178
    %v180 = vrot.slane %v179, 2
    %v181 = vadd.f32 %v179, %v180
    %v182 = vrot.slane %v181, 1
    %v183 = vadd.f32 %v181, %v182
    %v184 = vld [vmem:[#allocation5] sm:$0xff]
    %v185 = vld [vmem:[#allocation5 + $0x8] sm:$0xff]
    %v186 = vld [vmem:[#allocation5 + $0x10] sm:$0xff]
    %v187 = vld [vmem:[#allocation5 + $0x18] sm:$0xff]
    %v188 = vld [vmem:[#allocation5 + $0x20] sm:$0xff]
    %v189 = vld [vmem:[#allocation5 + $0x28] sm:$0xff]
    %v190 = vld [vmem:[#allocation5 + $0x30] sm:$0xff]
    %v191 = vld [vmem:[#allocation5 + $0x38] sm:$0xff]
    %v192 = vld [vmem:[#allocation5 + $0x40] sm:$0xff]
    %v193 = vld [vmem:[#allocation5 + $0x48] sm:$0xff]
    %v194 = vld [vmem:[#allocation5 + $0x50] sm:$0xff]
    %v195 = vld [vmem:[#allocation5 + $0x58] sm:$0xff]
    %v196 = vld [vmem:[#allocation5 + $0x60] sm:$0xff]
    %v197 = vld [vmem:[#allocation5 + $0x68] sm:$0xff]
    %v198 = vld [vmem:[#allocation5 + $0x70] sm:$0xff]
    %v199 = vld [vmem:[#allocation5 + $0x78] sm:$0xff]
    %v200 = vrot.slane %v184, 4
    %v201 = vadd.f32 %v184, %v200
    %v202 = vrot.slane %v201, 2
    %v203 = vadd.f32 %v201, %v202
    %v204 = vrot.slane %v203, 1
    %v205 = vadd.f32 %v203, %v204
    %v206 = vrot.slane %v185, 4
    %v207 = vadd.f32 %v185, %v206
    %v208 = vrot.slane %v207, 2
    %v209 = vadd.f32 %v207, %v208
    %v210 = vrot.slane %v209, 1
    %v211 = vadd.f32 %v209, %v210
    %v212 = vrot.slane %v186, 4
    %v213 = vadd.f32 %v186, %v212
    %v214 = vrot.slane %v213, 2
    %v215 = vadd.f32 %v213, %v214
    %v216 = vrot.slane %v215, 1
    %v217 = vadd.f32 %v215, %v216
    %v218 = vrot.slane %v187, 4
    %v219 = vadd.f32 %v187, %v218
    %v220 = vrot.slane %v219, 2
    %v221 = vadd.f32 %v219, %v220
    %v222 = vrot.slane %v221, 1
    %v223 = vadd.f32 %v221, %v222
    %v224 = vrot.slane %v188, 4
    %v225 = vadd.f32 %v188, %v224
    %v226 = vrot.slane %v225, 2
    %v227 = vadd.f32 %v225, %v226
    %v228 = vrot.slane %v227, 1
    %v229 = vadd.f32 %v227, %v228
    %v230 = vrot.slane %v189, 4
    %v231 = vadd.f32 %v189, %v230
    %v232 = vrot.slane %v231, 2
    %v233 = vadd.f32 %v231, %v232
    %v234 = vrot.slane %v233, 1
    %v235 = vadd.f32 %v233, %v234
    %v236 = vrot.slane %v190, 4
    %v237 = vadd.f32 %v190, %v236
    %v238 = vrot.slane %v237, 2
    %v239 = vadd.f32 %v237, %v238
    %v240 = vrot.slane %v239, 1
    %v241 = vadd.f32 %v239, %v240
    %v242 = vrot.slane %v191, 4
    %v243 = vadd.f32 %v191, %v242
    %v244 = vrot.slane %v243, 2
    %v245 = vadd.f32 %v243, %v244
    %v246 = vrot.slane %v245, 1
    %v247 = vadd.f32 %v245, %v246
    %v248 = vrot.slane %v192, 4
    %v249 = vadd.f32 %v192, %v248
    %v250 = vrot.slane %v249, 2
    %v251 = vadd.f32 %v249, %v250
    %v252 = vrot.slane %v251, 1
    %v253 = vadd.f32 %v251, %v252
    %v254 = vrot.slane %v193, 4
    %v255 = vadd.f32 %v193, %v254
    %v256 = vrot.slane %v255, 2
    %v257 = vadd.f32 %v255, %v256
    %v258 = vrot.slane %v257, 1
    %v259 = vadd.f32 %v257, %v258
    %v260 = vrot.slane %v194, 4
    %v261 = vadd.f32 %v194, %v260
    %v262 = vrot.slane %v261, 2
    %v263 = vadd.f32 %v261, %v262
    %v264 = vrot.slane %v263, 1
    %v265 = vadd.f32 %v263, %v264
    %v266 = vrot.slane %v195, 4
    %v267 = vadd.f32 %v195, %v266
    %v268 = vrot.slane %v267, 2
    %v269 = vadd.f32 %v267, %v268
    %v270 = vrot.slane %v269, 1
    %v271 = vadd.f32 %v269, %v270
    %v272 = vrot.slane %v196, 4
    %v273 = vadd.f32 %v196, %v272
    %v274 = vrot.slane %v273, 2
    %v275 = vadd.f32 %v273, %v274
    %v276 = vrot.slane %v275, 1
    %v277 = vadd.f32 %v275, %v276
    %v278 = vrot.slane %v197, 4
    %v279 = vadd.f32 %v197, %v278
    %v280 = vrot.slane %v279, 2
    %v281 = vadd.f32 %v279, %v280
    %v282 = vrot.slane %v281, 1
    %v283 = vadd.f32 %v281, %v282
    %v284 = vrot.slane %v198, 4
    %v285 = vadd.f32 %v198, %v284
    %v286 = vrot.slane %v285, 2
    %v287 = vadd.f32 %v285, %v286
    %v288 = vrot.slane %v287, 1
    %v289 = vadd.f32 %v287, %v288
    %v290 = vrot.slane %v199, 4
    %v291 = vadd.f32 %v199, %v290
    %v292 = vrot.slane %v291, 2
    %v293 = vadd.f32 %v291, %v292
    %v294 = vrot.slane %v293, 1
    %v295 = vadd.f32 %v293, %v294
    %v296 = vadd.f32 %v78, %v205
    %v297 = vadd.f32 %v85, %v211
    %v298 = vadd.f32 %v92, %v217
    %v299 = vadd.f32 %v99, %v223
    %v300 = vadd.f32 %v106, %v229
    %v301 = vadd.f32 %v113, %v235
    %v302 = vadd.f32 %v120, %v241
    %v303 = vadd.f32 %v127, %v247
    %v304 = vadd.f32 %v134, %v253
    %v305 = vadd.f32 %v141, %v259
    %v306 = vadd.f32 %v148, %v265
    %v307 = vadd.f32 %v155, %v271
    %v308 = vadd.f32 %v162, %v277
    %v309 = vadd.f32 %v169, %v283
    %v310 = vadd.f32 %v176, %v289
    %v311 = vadd.f32 %v183, %v295
    %vm328 = vcmask 1041409
    %v329 = vsel %vm328, %v297, %v296
    %vm330 = vcmask 1042434
    %v331 = vsel %vm330, %v298, %v329
    %vm332 = vcmask 1043459
    %v333 = vsel %vm332, %v299, %v331
    %vm334 = vcmask 1044484
    %v335 = vsel %vm334, %v300, %v333
    %vm336 = vcmask 1045509
    %v337 = vsel %vm336, %v301, %v335
    %vm338 = vcmask 1046534
    %v339 = vsel %vm338, %v302, %v337
    %vm340 = vcmask 1047559
    %v341 = vsel %vm340, %v303, %v339
    %v342 = vsel %vm328, %v305, %v304
    %v343 = vsel %vm330, %v306, %v342
    %v344 = vsel %vm332, %v307, %v343
    %v345 = vsel %vm334, %v308, %v344
    %v346 = vsel %vm336, %v309, %v345
    %v347 = vsel %vm338, %v310, %v346
    %v348 = vsel %vm340, %v311, %v347
    %351 = vst [vmem:[#allocation7] sm:$0xff] %v341
    %352 = vst [vmem:[#allocation7 + $0x8] sm:$0xff] %v348
    // Predicated region
    $region18: #{tpu_custom_call.1} parent=1 // pred_check
      _
    $region19: #{tpu_custom_call.1} parent=1 // pred_check_branch
      %354 = sbr.rel (0) target = $region21
    $region20: #{tpu_custom_call.1} parent=1 // pred_region
      %s356 = ssub.s32 256, 256
      %357 = vsyncadd [#allocation4], %s356
      %s358 = sshll.u32 [#allocation7], 4
      %s359 = int_to_ptr.vmem [resolvable:$true] %s358
      %364 = dma.vmem_to_hbm [thread:$0]  %s359, 256, %s2, [#allocation4], 128, 128, 8
    $region21: #{tpu_custom_call.1} parent=1 // pred_fallthru
      _
    // Predicated region
    $region22: #{tpu_custom_call.1} parent=1 // pred_check
      _
    $region23: #{tpu_custom_call.1} parent=1 // pred_check_branch
      %366 = sbr.rel (0) target = $region25
    $region24: #{tpu_custom_call.1} parent=1 // pred_region
      %367 = dma.done [#allocation4], 256
    $region25: #{tpu_custom_call.1} parent=1 // pred_fallthru
      _
    %368 = vsyncpa [#allocation3], 1
    %369 = vsyncpa [#allocation6], 1
    %370 = vsyncpa [#allocation4], 1

</llo_original>
